<compile_context>
chip_gen: v5e
topology: v5e:2x2
jax: 0.10.0
libtpu: 0.0.40
codegen_flags: <defaults>
</compile_context>

<pallas_src>
import functools

import jax
import jax.numpy as jnp
from jax import lax
from jax.experimental import pallas as pl
from jax.experimental.pallas import tpu as pltpu


def _loss_partials_kernel(logits_ref, labels_ref, out_ref,
                          max_sc, sum_sc, idx_sc, true_sc,
                          *, n_rows, n_cls, mask_cols):
    """Grid = (batch tiles, class chunks); online reduction over class chunks.

    At the last class chunk of each batch tile, writes an (8, 128) block:
      out[0, 0] = sum over valid rows of (logsumexp(row) - row[label])
      out[1, 0] = sum over valid rows of (first_argmax(row) - label)^2
    """
    i = pl.program_id(0)          # batch tile
    j = pl.program_id(1)          # class chunk
    last_j = pl.num_programs(1) - 1

    labels = labels_ref[...]                       # (tile_n, 1) int32
    tile_n, chunk_c = logits_ref.shape

    @pl.when(j == 0)
    def _():
        max_sc[...] = jnp.full_like(max_sc, -jnp.inf)
        sum_sc[...] = jnp.zeros_like(sum_sc)
        idx_sc[...] = jnp.full_like(idx_sc, n_cls)
        true_sc[...] = jnp.zeros_like(true_sc)

    blk = logits_ref[...].astype(jnp.float32)      # per-block upcast (bf16 in)
    col = lax.broadcasted_iota(jnp.int32, (tile_n, chunk_c), 1) + j * chunk_c
    if mask_cols:                                  # padded class columns -> -inf
        blk = jnp.where(col < n_cls, blk, -jnp.inf)

    blk_max = jnp.max(blk, axis=1, keepdims=True)
    run_max = max_sc[...]
    new_max = jnp.maximum(run_max, blk_max)

    # Running sum of exp, rescaled to the new running max.
    sum_sc[...] = (sum_sc[...] * jnp.exp(run_max - new_max)
                   + jnp.sum(jnp.exp(blk - new_max), axis=1, keepdims=True))

    # First-max index within this chunk; earlier chunks win ties (matches
    # torch.max(dim=1) "first maximal index" semantics).
    blk_idx = jnp.min(jnp.where(blk == blk_max, col, jnp.int32(n_cls)),
                      axis=1, keepdims=True)
    idx_sc[...] = jnp.where(blk_max > run_max, blk_idx, idx_sc[...])

    # True-class logit: each row's label falls in exactly one chunk.
    true_sc[...] = true_sc[...] + jnp.sum(
        jnp.where(col == labels, blk, 0.0), axis=1, keepdims=True)

    max_sc[...] = new_max

    @pl.when(j == last_j)
    def _():
        row = lax.broadcasted_iota(jnp.int32, (tile_n, 1), 0) + i * tile_n
        valid = row < n_rows                        # mask padded tail rows
        ce_rows = jnp.log(sum_sc[...]) + max_sc[...] - true_sc[...]
        diff = (idx_sc[...] - labels).astype(jnp.float32)
        ce_part = jnp.sum(jnp.where(valid, ce_rows, 0.0))
        sq_part = jnp.sum(jnp.where(valid, diff * diff, 0.0))
        # Lane/sublane-dense (8, 128) partials block.
        sub = lax.broadcasted_iota(jnp.int32, (8, 128), 0)
        lane = lax.broadcasted_iota(jnp.int32, (8, 128), 1)
        out_ref[...] = jnp.where((sub == 0) & (lane == 0), ce_part,
                                 jnp.where((sub == 1) & (lane == 0), sq_part, 0.0))


def _tpu_params():
    """Generation-aware (block byte target, scoped VMEM limit, TensorCores/chip)."""
    kind = ""
    try:
        kind = jax.devices()[0].device_kind.lower()
    except Exception:
        pass
    if "v7" in kind or "7x" in kind:
        # 64 MiB physical VMEM, 2 TCs/chip: smaller blocks, conservative limit.
        return 2 * 1024 * 1024, 32 * 1024 * 1024, 2
    if "v6" in kind or "v5" in kind:
        # 128 MiB physical VMEM, single TC, HBM-DMA bound: bigger blocks.
        return 4 * 1024 * 1024, 64 * 1024 * 1024, 1
    return 2 * 1024 * 1024, 32 * 1024 * 1024, 1


def _pick_tiles(n, c, itemsize, block_bytes, num_tc, tile_n=None, chunk_c=None):
    """Pick (batch tile rows, class chunk cols) from a pure byte budget."""
    row_align = max(8, 32 // itemsize)        # 8 rows for f32, 16 for bf16

    if chunk_c is None:
        if c * itemsize * row_align <= block_bytes:
            chunk_c = c                        # whole class row per block
        else:
            chunk_c = max(128, (block_bytes // (itemsize * row_align)) // 128 * 128)
    chunk_c = min(chunk_c, c)
    if chunk_c < c:
        chunk_c = max(128, (chunk_c // 128) * 128)   # lane-aligned class chunks

    if tile_n is None:
        tile_n = block_bytes // max(1, chunk_c * itemsize)
        tile_n = max(row_align, (tile_n // row_align) * row_align)
        if num_tc > 1 and n > row_align:
            # Guarantee >= num_tc batch tiles so the "parallel" grid axis
            # actually shards across both v7x TensorCores.
            per_core = -(-n // num_tc)                      # ceil(n / num_tc)
            per_core = -(-per_core // row_align) * row_align
            if per_core < n:
                tile_n = min(tile_n, per_core)
    tile_n = min(int(tile_n), n)
    if tile_n < n:
        tile_n = max(row_align, (tile_n // row_align) * row_align)
        if tile_n >= n:
            tile_n = n
    return int(tile_n), int(chunk_c)


def custom_cross_entropy_loss(outputs, labels, *, tile_n=None, chunk_c=None):
    """outputs: (N, C) float logits (f32 or bf16); labels: (N,) integer class ids."""
    n, c = outputs.shape
    if outputs.dtype not in (jnp.float32, jnp.bfloat16):
        outputs = outputs.astype(jnp.float32)      # bf16 / f32 stream as-is
    itemsize = jnp.dtype(outputs.dtype).itemsize

    block_bytes, vmem_limit, num_tc = _tpu_params()
    tile_n, chunk_c = _pick_tiles(n, c, itemsize, block_bytes, num_tc,
                                  tile_n, chunk_c)
    num_tiles = int(pl.cdiv(n, tile_n))
    num_chunks = int(pl.cdiv(c, chunk_c))

    labels2d = labels.astype(jnp.int32).reshape(n, 1)

    kernel = functools.partial(_loss_partials_kernel, n_rows=n, n_cls=c,
                               mask_cols=(c % chunk_c != 0))

    cost = pl.CostEstimate(
        flops=int(8 * n * c),
        transcendentals=int(n * c + n),
        bytes_accessed=int(n * c * itemsize + n * 4 + num_tiles * 8 * 128 * 4),
    )

    partials = pl.pallas_call(
        kernel,
        out_shape=jax.ShapeDtypeStruct((num_tiles, 8, 128), jnp.float32),
        grid_spec=pltpu.PrefetchScalarGridSpec(
            num_scalar_prefetch=0,
            grid=(num_tiles, num_chunks),
            in_specs=[
                pl.BlockSpec((tile_n, chunk_c), lambda i, j: (i, j)),
                pl.BlockSpec((tile_n, 1), lambda i, j: (i, 0)),
            ],
            out_specs=pl.BlockSpec((None, 8, 128), lambda i, j: (i, 0, 0)),
            scratch_shapes=[
                pltpu.VMEM((tile_n, 1), jnp.float32),   # running row max
                pltpu.VMEM((tile_n, 1), jnp.float32),   # running sum-exp
                pltpu.VMEM((tile_n, 1), jnp.int32),     # running first-argmax
                pltpu.VMEM((tile_n, 1), jnp.float32),   # true-class logit
            ],
        ),
        compiler_params=pltpu.CompilerParams(
            dimension_semantics=("parallel", "arbitrary"),
            vmem_limit_bytes=vmem_limit,
        ),
        cost_estimate=cost,
    )(outputs, labels2d)

    # Tiny final reduction / sqrt / multiply (parameter-free glue).
    ce_sum = jnp.sum(partials[:, 0, 0])
    sq_sum = jnp.sum(partials[:, 1, 0])
    n_f = jnp.float32(n)
    return jnp.sqrt(sq_sum / n_f) * (ce_sum / n_f)


def _reference(outputs, labels):
    # Pure-JAX reference for sanity checking.
    outputs = outputs.astype(jnp.float32)
    labels = labels.astype(jnp.int32)
    pred = jnp.argmax(outputs, axis=1).astype(jnp.int32)
    diff = (pred - labels).astype(jnp.float32)
    dist = jnp.sqrt(jnp.mean(diff * diff))
    lse = jax.scipy.special.logsumexp(outputs, axis=1)
    true_logit = jnp.take_along_axis(outputs, labels[:, None], axis=1)[:, 0]
    ce = jnp.mean(lse - true_logit)
    return dist * ce


if __name__ == "__main__":
    key = jax.random.PRNGKey(0)
    k1, k2 = jax.random.split(key)
    N, C = 20, 256   # batch not a multiple of the tile; 2 class chunks of 128
    outputs = jax.random.normal(k1, (N, C), dtype=jnp.float32)
    labels = jax.random.randint(k2, (N,), 0, C, dtype=jnp.int32)

    ref = _reference(outputs, labels)

    # Multi batch-tile + multi class-chunk path (3 x 8-row tiles, last padded;
    # 2 x 128-class chunks exercise the online class-axis reduction).
    loss_a = custom_cross_entropy_loss(outputs, labels, tile_n=8, chunk_c=128)
    jax.block_until_ready(loss_a)
    assert jnp.allclose(loss_a, ref, rtol=1e-5, atol=1e-5), (loss_a, ref)

    # Auto-sized path (single full block at this small shape; 2 tiles on v7x).
    loss_b = custom_cross_entropy_loss(outputs, labels)
    jax.block_until_ready(loss_b)
    assert jnp.allclose(loss_b, ref, rtol=1e-5, atol=1e-5), (loss_b, ref)

    # bf16 passthrough path (streams bf16, upcasts to f32 inside the kernel).
    outputs_bf16 = outputs.astype(jnp.bfloat16)
    ref_bf16 = _reference(outputs_bf16.astype(jnp.float32), labels)
    loss_c = custom_cross_entropy_loss(outputs_bf16, labels)
    jax.block_until_ready(loss_c)
    assert jnp.allclose(loss_c, ref_bf16, rtol=1e-4, atol=1e-4), (loss_c, ref_bf16)

    print("KERNEL_OK")
</pallas_src>

<mosaic_0001>
module attributes {stable_mosaic.version = 11 : i64} {
  func.func @_loss_partials_kernel(%arg0: i32, %arg1: i32, %arg2: memref<8x128xf32, #tpu.memory_space<vmem>>, %arg3: memref<8x1xi32, #tpu.memory_space<vmem>>, %arg4: memref<1x8x128xf32, #tpu.memory_space<vmem>>, %arg5: memref<8x1xf32, #tpu.memory_space<vmem>>, %arg6: memref<8x1xf32, #tpu.memory_space<vmem>>, %arg7: memref<8x1xi32, #tpu.memory_space<vmem>>, %arg8: memref<8x1xf32, #tpu.memory_space<vmem>>) attributes {dimension_semantics = [#tpu.dimension_semantics<parallel>, #tpu.dimension_semantics<arbitrary>], iteration_bounds = array<i64: 3, 2>, scalar_prefetch = 0 : i64, scratch_operands = 4 : i64, tpu.core_type = #tpu.core_type<tc>, window_params = [{transform_indices = @transform_0, window_bounds = array<i64: 8, 128>}, {transform_indices = @transform_1, window_bounds = array<i64: 8, 1>}, {transform_indices = @transform_2, window_bounds = array<i64: 1, 8, 128>}]} {
    %c0 = arith.constant 0 : index
    %c0_0 = arith.constant 0 : index
    %0 = vector.load %arg3[%c0, %c0_0] : memref<8x1xi32, #tpu.memory_space<vmem>>, vector<8x1xi32>
    %c0_i32 = arith.constant 0 : i32
    %1 = arith.cmpi eq, %arg1, %c0_i32 : i32
    %2 = arith.extui %1 : i1 to i32
    %c0_i32_1 = arith.constant 0 : i32
    %3 = arith.cmpi ne, %2, %c0_i32_1 : i32
    scf.if %3 {
      %cst_25 = arith.constant 0xFF800000 : f32
      %47 = vector.broadcast %cst_25 : f32 to vector<8x1xf32>
      %c0_26 = arith.constant 0 : index
      %c0_27 = arith.constant 0 : index
      %48 = vector.load %arg5[%c0_26, %c0_27] : memref<8x1xf32, #tpu.memory_space<vmem>>, vector<8x1xf32>
      tpu.vector_store %arg5[%c0_26, %c0_27], %47 {strides = array<i32>} : memref<8x1xf32, #tpu.memory_space<vmem>>, vector<8x1xf32>,
      %cst_28 = arith.constant 0.000000e+00 : f32
      %49 = vector.broadcast %cst_28 : f32 to vector<8x1xf32>
      %c0_29 = arith.constant 0 : index
      %c0_30 = arith.constant 0 : index
      %50 = vector.load %arg6[%c0_29, %c0_30] : memref<8x1xf32, #tpu.memory_space<vmem>>, vector<8x1xf32>
      tpu.vector_store %arg6[%c0_29, %c0_30], %49 {strides = array<i32>} : memref<8x1xf32, #tpu.memory_space<vmem>>, vector<8x1xf32>,
      %c256_i32_31 = arith.constant 256 : i32
      %51 = vector.broadcast %c256_i32_31 : i32 to vector<8x1xi32>
      %c0_32 = arith.constant 0 : index
      %c0_33 = arith.constant 0 : index
      %52 = vector.load %arg7[%c0_32, %c0_33] : memref<8x1xi32, #tpu.memory_space<vmem>>, vector<8x1xi32>
      tpu.vector_store %arg7[%c0_32, %c0_33], %51 {strides = array<i32>} : memref<8x1xi32, #tpu.memory_space<vmem>>, vector<8x1xi32>,
      %cst_34 = arith.constant 0.000000e+00 : f32
      %53 = vector.broadcast %cst_34 : f32 to vector<8x1xf32>
      %c0_35 = arith.constant 0 : index
      %c0_36 = arith.constant 0 : index
      %54 = vector.load %arg8[%c0_35, %c0_36] : memref<8x1xf32, #tpu.memory_space<vmem>>, vector<8x1xf32>
      tpu.vector_store %arg8[%c0_35, %c0_36], %53 {strides = array<i32>} : memref<8x1xf32, #tpu.memory_space<vmem>>, vector<8x1xf32>,
    } else {
    }
    %c0_2 = arith.constant 0 : index
    %c0_3 = arith.constant 0 : index
    %4 = vector.load %arg2[%c0_2, %c0_3] : memref<8x128xf32, #tpu.memory_space<vmem>>, vector<8x128xf32>
    %5 = tpu.iota {dimensions = array<i32: 1>} : vector<8x128xi32>
    %c128_i32 = arith.constant 128 : i32
    %6 = arith.muli %arg1, %c128_i32 : i32
    %7 = vector.broadcast %6 : i32 to vector<8x128xi32>
    %8 = arith.addi %5, %7 : vector<8x128xi32>
    %cst = arith.constant dense<0xFF800000> : vector<8xf32>
    %9 = vector.multi_reduction <maximumf>, %4, %cst [1] : vector<8x128xf32> to vector<8xf32>
    %10 = vector.shape_cast %9 : vector<8xf32> to vector<8x1xf32>
    %c0_4 = arith.constant 0 : index
    %c0_5 = arith.constant 0 : index
    %11 = vector.load %arg5[%c0_4, %c0_5] : memref<8x1xf32, #tpu.memory_space<vmem>>, vector<8x1xf32>
    %12 = arith.maximumf %11, %10 : vector<8x1xf32>
    %c0_6 = arith.constant 0 : index
    %c0_7 = arith.constant 0 : index
    %13 = vector.load %arg6[%c0_6, %c0_7] : memref<8x1xf32, #tpu.memory_space<vmem>>, vector<8x1xf32>
    %14 = arith.subf %11, %12 : vector<8x1xf32>
    %15 = math.exp %14 : vector<8x1xf32>
    %16 = arith.mulf %13, %15 : vector<8x1xf32>
    %17 = vector.broadcast %12 : vector<8x1xf32> to vector<8x128xf32>
    %18 = arith.subf %4, %17 : vector<8x128xf32>
    %19 = math.exp %18 : vector<8x128xf32>
    %cst_8 = arith.constant dense<0.000000e+00> : vector<8xf32>
    %20 = vector.multi_reduction <add>, %19, %cst_8 [1] : vector<8x128xf32> to vector<8xf32>
    %21 = vector.shape_cast %20 : vector<8xf32> to vector<8x1xf32>
    %22 = arith.addf %16, %21 : vector<8x1xf32>
    %c0_9 = arith.constant 0 : index
    %c0_10 = arith.constant 0 : index
    %23 = vector.load %arg6[%c0_9, %c0_10] : memref<8x1xf32, #tpu.memory_space<vmem>>, vector<8x1xf32>
    tpu.vector_store %arg6[%c0_9, %c0_10], %22 {strides = array<i32>} : memref<8x1xf32, #tpu.memory_space<vmem>>, vector<8x1xf32>,
    %24 = vector.broadcast %10 : vector<8x1xf32> to vector<8x128xf32>
    %25 = arith.cmpf oeq, %4, %24 : vector<8x128xf32>
    %c256_i32 = arith.constant 256 : i32
    %26 = vector.broadcast %c256_i32 : i32 to vector<8x128xi32>
    %27 = arith.select %25, %8, %26 : vector<8x128xi1>, vector<8x128xi32>
    %cst_11 = arith.constant dense<2147483647> : vector<8xi32>
    %28 = vector.multi_reduction <minsi>, %27, %cst_11 [1] : vector<8x128xi32> to vector<8xi32>
    %29 = vector.shape_cast %28 : vector<8xi32> to vector<8x1xi32>
    %30 = arith.cmpf ogt, %10, %11 : vector<8x1xf32>
    %c0_12 = arith.constant 0 : index
    %c0_13 = arith.constant 0 : index
    %31 = vector.load %arg7[%c0_12, %c0_13] : memref<8x1xi32, #tpu.memory_space<vmem>>, vector<8x1xi32>
    %32 = arith.select %30, %29, %31 : vector<8x1xi1>, vector<8x1xi32>
    %c0_14 = arith.constant 0 : index
    %c0_15 = arith.constant 0 : index
    %33 = vector.load %arg7[%c0_14, %c0_15] : memref<8x1xi32, #tpu.memory_space<vmem>>, vector<8x1xi32>
    tpu.vector_store %arg7[%c0_14, %c0_15], %32 {strides = array<i32>} : memref<8x1xi32, #tpu.memory_space<vmem>>, vector<8x1xi32>,
    %c0_16 = arith.constant 0 : index
    %c0_17 = arith.constant 0 : index
    %34 = vector.load %arg8[%c0_16, %c0_17] : memref<8x1xf32, #tpu.memory_space<vmem>>, vector<8x1xf32>
    %35 = vector.broadcast %0 : vector<8x1xi32> to vector<8x128xi32>
    %36 = arith.cmpi eq, %8, %35 : vector<8x128xi32>
    %cst_18 = arith.constant 0.000000e+00 : f32
    %37 = vector.broadcast %cst_18 : f32 to vector<8x128xf32>
    %38 = arith.select %36, %4, %37 : vector<8x128xi1>, vector<8x128xf32>
    %cst_19 = arith.constant dense<0.000000e+00> : vector<8xf32>
    %39 = vector.multi_reduction <add>, %38, %cst_19 [1] : vector<8x128xf32> to vector<8xf32>
    %40 = vector.shape_cast %39 : vector<8xf32> to vector<8x1xf32>
    %41 = arith.addf %34, %40 : vector<8x1xf32>
    %c0_20 = arith.constant 0 : index
    %c0_21 = arith.constant 0 : index
    %42 = vector.load %arg8[%c0_20, %c0_21] : memref<8x1xf32, #tpu.memory_space<vmem>>, vector<8x1xf32>
    tpu.vector_store %arg8[%c0_20, %c0_21], %41 {strides = array<i32>} : memref<8x1xf32, #tpu.memory_space<vmem>>, vector<8x1xf32>,
    %c0_22 = arith.constant 0 : index
    %c0_23 = arith.constant 0 : index
    %43 = vector.load %arg5[%c0_22, %c0_23] : memref<8x1xf32, #tpu.memory_space<vmem>>, vector<8x1xf32>
    tpu.vector_store %arg5[%c0_22, %c0_23], %12 {strides = array<i32>} : memref<8x1xf32, #tpu.memory_space<vmem>>, vector<8x1xf32>,
    %c1_i32 = arith.constant 1 : i32
    %44 = arith.cmpi eq, %arg1, %c1_i32 : i32
    %45 = arith.extui %44 : i1 to i32
    %c0_i32_24 = arith.constant 0 : i32
    %46 = arith.cmpi ne, %45, %c0_i32_24 : i32
    scf.if %46 {
      %47 = tpu.iota {dimensions = array<i32: 0>} : vector<8x1xi32>
      %c8_i32 = arith.constant 8 : i32
      %48 = arith.muli %arg0, %c8_i32 : i32
      %49 = vector.broadcast %48 : i32 to vector<8x1xi32>
      %50 = arith.addi %47, %49 : vector<8x1xi32>
      %c20_i32 = arith.constant 20 : i32
      %51 = vector.broadcast %c20_i32 : i32 to vector<8x1xi32>
      %52 = arith.cmpi slt, %50, %51 : vector<8x1xi32>
      %c0_25 = arith.constant 0 : index
      %c0_26 = arith.constant 0 : index
      %53 = vector.load %arg6[%c0_25, %c0_26] : memref<8x1xf32, #tpu.memory_space<vmem>>, vector<8x1xf32>
      %54 = math.log %53 : vector<8x1xf32>
      %c0_27 = arith.constant 0 : index
      %c0_28 = arith.constant 0 : index
      %55 = vector.load %arg5[%c0_27, %c0_28] : memref<8x1xf32, #tpu.memory_space<vmem>>, vector<8x1xf32>
      %56 = arith.addf %54, %55 : vector<8x1xf32>
      %c0_29 = arith.constant 0 : index
      %c0_30 = arith.constant 0 : index
      %57 = vector.load %arg8[%c0_29, %c0_30] : memref<8x1xf32, #tpu.memory_space<vmem>>, vector<8x1xf32>
      %58 = arith.subf %56, %57 : vector<8x1xf32>
      %c0_31 = arith.constant 0 : index
      %c0_32 = arith.constant 0 : index
      %59 = vector.load %arg7[%c0_31, %c0_32] : memref<8x1xi32, #tpu.memory_space<vmem>>, vector<8x1xi32>
      %60 = arith.subi %59, %0 : vector<8x1xi32>
      %61 = arith.sitofp %60 : vector<8x1xi32> to vector<8x1xf32>
      %cst_33 = arith.constant 0.000000e+00 : f32
      %62 = vector.broadcast %cst_33 : f32 to vector<8x1xf32>
      %63 = arith.select %52, %58, %62 : vector<8x1xi1>, vector<8x1xf32>
      %64 = vector.shape_cast %63 : vector<8x1xf32> to vector<1x8x1xf32>
      %cst_34 = arith.constant dense<0.000000e+00> : vector<1xf32>
      %65 = vector.multi_reduction <add>, %64, %cst_34 [1, 2] : vector<1x8x1xf32> to vector<1xf32>
      %66 = vector.shape_cast %65 : vector<1xf32> to vector<1x1x1xf32>
      %67 = vector.extract %66[0, 0, 0] : f32 from vector<1x1x1xf32>
      %68 = arith.mulf %61, %61 : vector<8x1xf32>
      %cst_35 = arith.constant 0.000000e+00 : f32
      %69 = vector.broadcast %cst_35 : f32 to vector<8x1xf32>
      %70 = arith.select %52, %68, %69 : vector<8x1xi1>, vector<8x1xf32>
      %71 = vector.shape_cast %70 : vector<8x1xf32> to vector<1x8x1xf32>
      %cst_36 = arith.constant dense<0.000000e+00> : vector<1xf32>
      %72 = vector.multi_reduction <add>, %71, %cst_36 [1, 2] : vector<1x8x1xf32> to vector<1xf32>
      %73 = vector.shape_cast %72 : vector<1xf32> to vector<1x1x1xf32>
      %74 = vector.extract %73[0, 0, 0] : f32 from vector<1x1x1xf32>
      %75 = tpu.iota {dimensions = array<i32: 0>} : vector<8x128xi32>
      %76 = tpu.iota {dimensions = array<i32: 1>} : vector<8x128xi32>
      %c0_i32_37 = arith.constant 0 : i32
      %77 = vector.broadcast %c0_i32_37 : i32 to vector<8x128xi32>
      %78 = arith.cmpi eq, %75, %77 : vector<8x128xi32>
      %c0_i32_38 = arith.constant 0 : i32
      %79 = vector.broadcast %c0_i32_38 : i32 to vector<8x128xi32>
      %80 = arith.cmpi eq, %76, %79 : vector<8x128xi32>
      %81 = arith.andi %78, %80 : vector<8x128xi1>
      %c1_i32_39 = arith.constant 1 : i32
      %82 = vector.broadcast %c1_i32_39 : i32 to vector<8x128xi32>
      %83 = arith.cmpi eq, %75, %82 : vector<8x128xi32>
      %c0_i32_40 = arith.constant 0 : i32
      %84 = vector.broadcast %c0_i32_40 : i32 to vector<8x128xi32>
      %85 = arith.cmpi eq, %76, %84 : vector<8x128xi32>
      %86 = arith.andi %83, %85 : vector<8x128xi1>
      %cst_41 = arith.constant 0.000000e+00 : f32
      %87 = vector.broadcast %74 : f32 to vector<8x128xf32>
      %88 = vector.broadcast %cst_41 : f32 to vector<8x128xf32>
      %89 = arith.select %86, %87, %88 : vector<8x128xi1>, vector<8x128xf32>
      %90 = vector.broadcast %67 : f32 to vector<8x128xf32>
      %91 = arith.select %81, %90, %89 : vector<8x128xi1>, vector<8x128xf32>
      %c0_42 = arith.constant 0 : index
      %c0_43 = arith.constant 0 : index
      %c0_44 = arith.constant 0 : index
      %92 = vector.load %arg4[%c0_42, %c0_43, %c0_44] : memref<1x8x128xf32, #tpu.memory_space<vmem>>, vector<1x8x128xf32>
      %93 = vector.shape_cast %92 : vector<1x8x128xf32> to vector<8x128xf32>
      %94 = vector.shape_cast %91 : vector<8x128xf32> to vector<1x8x128xf32>
      tpu.vector_store %arg4[%c0_42, %c0_43, %c0_44], %94 {strides = array<i32>} : memref<1x8x128xf32, #tpu.memory_space<vmem>>, vector<1x8x128xf32>,
    } else {
    }
    return
  }
  func.func @transform_0(%arg0: i32, %arg1: i32) -> (i32, i32) {
    %c0_i32 = arith.constant 0 : i32
    return %arg0, %arg1 : i32, i32
  }
  func.func @transform_1(%arg0: i32, %arg1: i32) -> (i32, i32) {
    %c0_i32 = arith.constant 0 : i32
    %c0_i32_0 = arith.constant 0 : i32
    return %arg0, %c0_i32 : i32, i32
  }
  func.func @transform_2(%arg0: i32, %arg1: i32) -> (i32, i32, i32) {
    %c0_i32 = arith.constant 0 : i32
    %c0_i32_0 = arith.constant 0 : i32
    %c0_i32_1 = arith.constant 0 : i32
    return %arg0, %c0_i32, %c0_i32_0 : i32, i32, i32
  }
}

</mosaic_0001>

<llo_original>
// kernel: tpu_custom_call.1
$region0: #{tpu_custom_call.1}
  #allocation0 [shape = 'u32[]', space=smem, size = 0x4, offset = 0x4, fixed_abs, tag = 'smem constant byte address 0x4 - core index']
  #allocation1 [shape = 'u32[72,128]{1,0:T(1,128)}', space=vmem, size = 0x9000, scoped, tag = 'internal scratch']
  #allocation2 [shape = 'f32[8,1]{1,0:T(8,128)}', space=vmem, size = 0x1000, scoped, tag = 'scratch operand']
  #allocation3 [shape = 'f32[8,1]{1,0:T(8,128)}', space=vmem, size = 0x1000, scoped, tag = 'scratch operand']
  #allocation4 [shape = 's32[8,1]{1,0:T(8,128)}', space=vmem, size = 0x1000, scoped, tag = 'scratch operand']
  #allocation5 [shape = 'f32[8,1]{1,0:T(8,128)}', space=vmem, size = 0x1000, scoped, tag = 'scratch operand']
  %s0 = inlined_call_operand.hbm [shape: f32[20,256], index: 0, kind: input, shape index: {}]
  %s1 = inlined_call_operand.vmem [shape: s32[20,1], index: 1, kind: input, shape index: {}]
  %s2 = inlined_call_operand.hbm [shape: f32[3,8,128], index: 2, kind: output, shape index: {}]
  %s3 = sld [smem:[#allocation0]]
  $region53: #{tpu_custom_call.1} parent=0
    _
  %s5 = ssub.s32 1, %s3
  %s6 = scalar_select 0, %s5, %s3
  $region1: #{tpu_custom_call.1} parent=0
    #allocation6 [shape = 'u8[8192]{0}', space=vmem, size = 0x2000, scoped, tag = 'input window, operand 0']
    #allocation7 [shape = 's32[2]{0}', space=sflag, size = 0x8, scoped, tag = 'scoped memory for tpu_custom_call.1']
    #allocation8 [shape = 's32[2]{0}', space=sflag, size = 0x8, scoped, tag = 'scoped memory for tpu_custom_call.1']
    #allocation9 [shape = 'u8[8192]{0}', space=vmem, size = 0x2000, scoped, tag = 'output window, operand 0']
    %7 = vsyncpa [#allocation7], 0
    %s8 = scalar_lea.sflag [#allocation7], 1
    %9 = vsyncpa %s8, 0
    %10 = vsyncpa [#allocation8], 0
    %s11 = scalar_lea.sflag [#allocation8], 1
    %12 = vsyncpa %s11, 0
    loop: start=0, step=1, limit=8
    $region2: #{tpu_custom_call.1} parent=1 // loop_pre_header
      _
    $region3: #{tpu_custom_call.1} parent=1 // loop_header
      %s14 = sphi 0, %s18
      %p15 = scmp.ge.s32.totalorder %s14, 8
      %s21 = sphi 0, %s33
      %s22 = sphi 0, %s29
      %s23 = sphi 0, %s21
      %s24 = sphi 0, %s22
      %s25 = sphi 0, %s23
      %s26 = sphi 0, %s24
      %s38 = sphi 0, %s40
      %s41 = sphi 0, %s38
      %s42 = sphi 0, %s41
      %s58 = sphi 0, %s42
      %s64 = sphi 0, %s66
      %s67 = sphi 0, %s64
      %s68 = sphi 0, %s67
      %s84 = sphi 0, %s68
      %s90 = sphi 0, %s92
      %s93 = sphi 0, %s90
      %s94 = sphi 0, %s93
      %s110 = sphi 0, %s94
    $region4: #{tpu_custom_call.1} parent=1 // loop_header_branch
      %17 = sbr.rel (%p15) target = $region8
    $region5: #{tpu_custom_call.1} parent=1 // loop_body
      %s19 = ssub.s32 %s14, 1
      %s20 = ssub.s32 %s14, 2
      %s27 = sadd.s32 1, %s22
      %p28 = scmp.ge.s32.totalorder %s27, 2
      %s29 = scalar_select %p28, 0, %s27
      %s30 = sadd.s32 1, %s21
      %s31 = scalar_select %p28, %s30, %s21
      %p32 = scmp.ge.s32.totalorder %s31, 3
      %s33 = scalar_select %p32, 0, %s31
      %s34 = ssub.s32 %s21, %s33
      %s35 = ssub.s32 %s22, %s29
      %s36 = sor.u32 %s34, %s35
      %p37 = scmp.eq.s32.totalorder %s36, 0
      %s39 = sadd.s32 %s38, 1
      %s40 = scalar_select %p37, %s38, %s39
      %p43 = pneg %p37
      %p44 = scmp.eq.s32.totalorder %s14, 5
      %p45 = por %p43, %p44
      %p46 = scmp.ne.s32.totalorder %s38, %s41
      %p47 = scmp.eq.s32.totalorder %s14, 0
      %p48 = por %p46, %p47
      %p49 = scmp.ne.s32.totalorder %s38, %s41
      %p50 = scmp.eq.s32.totalorder %s19, 5
      %p51 = por %p49, %p50
      %p52 = scmp.ne.s32.totalorder %s41, %s42
      %p53 = scmp.eq.s32.totalorder %s19, 0
      %p54 = por %p52, %p53
      %p55 = scmp.ne.s32.totalorder %s41, %s42
      %p56 = scmp.eq.s32.totalorder %s20, 5
      %p57 = por %p55, %p56
      %p59 = scmp.ne.s32.totalorder %s42, %s58
      %p60 = scmp.eq.s32.totalorder %s20, 0
      %p61 = por %p59, %p60
      %s62 = ssub.s32 %s21, %s33
      %p63 = scmp.eq.s32.totalorder %s62, 0
      %s65 = sadd.s32 %s64, 1
      %s66 = scalar_select %p63, %s64, %s65
      %p69 = pneg %p63
      %p70 = scmp.eq.s32.totalorder %s14, 5
      %p71 = por %p69, %p70
      %p72 = scmp.ne.s32.totalorder %s64, %s67
      %p73 = scmp.eq.s32.totalorder %s14, 0
      %p74 = por %p72, %p73
      %p75 = scmp.ne.s32.totalorder %s64, %s67
      %p76 = scmp.eq.s32.totalorder %s19, 5
      %p77 = por %p75, %p76
      %p78 = scmp.ne.s32.totalorder %s67, %s68
      %p79 = scmp.eq.s32.totalorder %s19, 0
      %p80 = por %p78, %p79
      %p81 = scmp.ne.s32.totalorder %s67, %s68
      %p82 = scmp.eq.s32.totalorder %s20, 5
      %p83 = por %p81, %p82
      %p85 = scmp.ne.s32.totalorder %s68, %s84
      %p86 = scmp.eq.s32.totalorder %s20, 0
      %p87 = por %p85, %p86
      %s88 = ssub.s32 %s21, %s33
      %p89 = scmp.eq.s32.totalorder %s88, 0
      %s91 = sadd.s32 %s90, 1
      %s92 = scalar_select %p89, %s90, %s91
      %p95 = pneg %p89
      %p96 = scmp.eq.s32.totalorder %s14, 5
      %p97 = por %p95, %p96
      %p98 = scmp.ne.s32.totalorder %s90, %s93
      %p99 = scmp.eq.s32.totalorder %s14, 0
      %p100 = por %p98, %p99
      %p101 = scmp.ne.s32.totalorder %s90, %s93
      %p102 = scmp.eq.s32.totalorder %s19, 5
      %p103 = por %p101, %p102
      %p104 = scmp.ne.s32.totalorder %s93, %s94
      %p105 = scmp.eq.s32.totalorder %s19, 0
      %p106 = por %p104, %p105
      %p107 = scmp.ne.s32.totalorder %s93, %s94
      %p108 = scmp.eq.s32.totalorder %s20, 5
      %p109 = por %p107, %p108
      %p111 = scmp.ne.s32.totalorder %s94, %s110
      %p112 = scmp.eq.s32.totalorder %s20, 0
      %p113 = por %p111, %p112
      %p114 = scmp.le.s32.totalorder 1, %s14
      %p115 = scmp.lt.s32.totalorder %s14, 7
      %p116 = pnand %p114, %p115
      %p117 = pneg %p116
      // Predicated region
      $region9: #{tpu_custom_call.1} parent=5 // pred_check
        _
      $region10: #{tpu_custom_call.1} parent=5 // pred_check_branch
        %119 = sbr.rel (%p116) target = $region12
      $region11: #{tpu_custom_call.1} parent=5 // pred_region
        %s120 = ssub.s32 %s14, 1
      $region12: #{tpu_custom_call.1} parent=5 // pred_fallthru
        _
      %p121 = scmp.lt.s32.totalorder %s14, 6
      // Predicated region
      $region13: #{tpu_custom_call.1} parent=5 // pred_check
        %p122 = pneg %p121
      $region14: #{tpu_custom_call.1} parent=5 // pred_check_branch
        %124 = sbr.rel (%p122) target = $region16
      $region15: #{tpu_custom_call.1} parent=5 // pred_region
        // Predicated region
        $region17: #{tpu_custom_call.1} parent=15 // pred_check
          %p125 = pneg %p48
        $region18: #{tpu_custom_call.1} parent=15 // pred_check_branch
          %127 = sbr.rel (%p125) target = $region20
        $region19: #{tpu_custom_call.1} parent=15 // pred_region
          %s128 = sand.u32 %s38, 1
          %s129 = scalar_lea.sflag [#allocation7], %s128
          %s130 = sand.u32 %s38, 1
          %s131 = smul.addr %s130, 8
          %s132 = scalar_lea.vmem [#allocation6], %s131
          %134 = vsyncadd %s129, 0
          %s135 = smul.addr %s21, 2
          %s136 = sadd.s32 %s22, %s135
          %s137 = smul.addr %s136, 8
          %s138 = scalar_lea.hbm %s0, %s137
          %s140 = sshll.u32 %s138, 4
          %s141 = int_to_ptr.hbm [resolvable:$true] %s140
          %s142 = sshll.u32 %s132, 4
          %s143 = int_to_ptr.vmem [resolvable:$true] %s142
          %145 = dma.hbm_to_vmem [thread:$0]  %s141, 128, %s143, %s129
        $region20: #{tpu_custom_call.1} parent=15 // pred_fallthru
          _
        // Predicated region
        $region21: #{tpu_custom_call.1} parent=15 // pred_check
          %p146 = pneg %p74
        $region22: #{tpu_custom_call.1} parent=15 // pred_check_branch
          %148 = sbr.rel (%p146) target = $region24
        $region23: #{tpu_custom_call.1} parent=15 // pred_region
          %p149 = scmp.lt.s32.totalorder %s21, 2
          %s150 = scalar_select %p149, %s21, 2
          %s151 = smul.addr %s150, 8
          %s152 = scalar_lea.vmem %s1, %s151
        $region24: #{tpu_custom_call.1} parent=15 // pred_fallthru
          _
      $region16: #{tpu_custom_call.1} parent=5 // pred_fallthru
        _
      %p153 = scmp.le.s32.totalorder 1, %s14
      %p154 = scmp.lt.s32.totalorder %s14, 7
      %p155 = pnand %p153, %p154
      %p156 = pneg %p155
      // Predicated region
      $region25: #{tpu_custom_call.1} parent=5 // pred_check
        _
      $region26: #{tpu_custom_call.1} parent=5 // pred_check_branch
        %158 = sbr.rel (%p155) target = $region28
      $region27: #{tpu_custom_call.1} parent=5 // pred_region
        %s159 = ssub.s32 %s14, 1
        %s160 = sand.u32 %s41, 1
        %s161 = scalar_lea.sflag [#allocation7], %s160
        %s162 = sand.u32 %s41, 1
        %s163 = smul.addr %s162, 8
        %s164 = scalar_lea.vmem [#allocation6], %s163
        // Predicated region
        $region29: #{tpu_custom_call.1} parent=27 // pred_check
          %p165 = pneg %p54
        $region30: #{tpu_custom_call.1} parent=27 // pred_check_branch
          %167 = sbr.rel (%p165) target = $region32
        $region31: #{tpu_custom_call.1} parent=27 // pred_region
          %169 = dma.done %s161, 128
        $region32: #{tpu_custom_call.1} parent=27 // pred_fallthru
          _
        %s170 = sand.u32 %s41, 1
        %s171 = scalar_lea.sflag [#allocation7], %s170
        %s172 = sand.u32 %s41, 1
        %s173 = smul.addr %s172, 8
        %s174 = scalar_lea.vmem [#allocation6], %s173
        %p175 = pneg %p54
        %p176 = pneg %p51
        %p177 = scmp.lt.s32.totalorder %s23, 2
        %s178 = scalar_select %p177, %s23, 2
        %s179 = smul.addr %s178, 8
        %s180 = scalar_lea.vmem %s1, %s179
        %p181 = pneg %p80
        %p182 = pneg %p77
        %p183 = pneg %p106
        %p184 = pneg %p103
        %s185 = sand.u32 %s93, 1
        %s186 = scalar_lea.sflag [#allocation8], %s185
        %s187 = sand.u32 %s93, 1
        %s188 = smul.addr %s187, 8
        %s189 = scalar_lea.vmem [#allocation9], %s188
        %p190 = scmp.lt.s32.totalorder %s23, 2
        %s191 = scalar_select %p190, %s23, 2
        %s192 = smul.addr %s191, 8
        %s193 = scalar_lea.vmem %s1, %s192
        %v194 = vld [vmem:[%s193] sm:$0xff]
        %p195 = scmp.eq.s32.totalorder %s24, 0
        // Predicated region
        $region33: #{tpu_custom_call.1} parent=27 // pred_check
          %p196 = pneg %p195
        $region34: #{tpu_custom_call.1} parent=27 // pred_check_branch
          %198 = sbr.rel (%p196) target = $region36
        $region35: #{tpu_custom_call.1} parent=27 // pred_region
          %vm199 = vcmask 7168
          %200 = vst.msk [vmem:[#allocation2] sm:$0xff] %vm199, -inf
          %201 = vst.msk [vmem:[#allocation3] sm:$0xff] %vm199, 0.0
          %202 = vst.msk [vmem:[#allocation4] sm:$0xff] %vm199, 256
          %203 = vst.msk [vmem:[#allocation5] sm:$0xff] %vm199, 0.0
        $region36: #{tpu_custom_call.1} parent=27 // pred_fallthru
          _
        %v204 = vld [vmem:[%s164] sm:$0xff]
        %v205 = vlaneseq
        %v206 = vand.u32 %v205, 127
        %s207 = smul.u32 %s24, 128
        %v208 = vstv %s207
        %v209 = vadd.s32 %v206, %v208
        %210 = vmax.xlane.f32.xlu0 %v204
        %v211 = vpop.xlane.xlu0 %210
        %v212 = vld [vmem:[#allocation2] sm:$0xff]
        %v213 = vmax.f32 %v212, %v211
        %v214 = vld [vmem:[#allocation3] sm:$0xff]
        %v215 = vsub.f32 %v212, %v213
        %v216 = vmul.f32 %v215, 1.442695
        %v217 = vpow.pop %v216
        %v218 = vmul.f32 %v214, %v217
        %220 = vset.pattern.permute.xlu0 0
        %221 = vperm.xlu0 %220, %v213
        %v222 = vpop.permute.xlu0 %221
        %v224 = vsub.f32 %v204, %v222
        %v225 = vmul.f32 %v224, 1.442695
        %v226 = vpow.pop %v225
        %227 = vadd.xlane.f32.xlu0 %v226
        %v228 = vpop.xlane.xlu0 %227
        %v229 = vadd.f32 %v218, %v228
        %vm230 = vcmask 7168
        %231 = vst.msk [vmem:[#allocation3] sm:$0xff] %vm230, %v229
        %vm232 = vcmp.eq.f32.partialorder %v204, %v211
        %v233 = vsel %vm232, %v209, 256
        %v234 = vand.u32 %v233, 65535
        %v235 = vshra.s32 %v233, 16
        %v236 = vcvt.s32.f32 %v234
        %v237 = vcvt.s32.f32 %v235
        %238 = vmin.xlane.f32.xlu0 %v237
        %v239 = vpop.xlane.xlu0 %238
        %vm240 = vcmp.eq.f32.partialorder %v237, %v239
        %v241 = vsel %vm240, %v236, inf
        %242 = vmin.xlane.f32.xlu0 %v241
        %v243 = vpop.xlane.xlu0 %242
        %v244 = vcvt.f32.s32 %v243
        %v245 = vcvt.f32.s32 %v239
        %v246 = vshll.u32 %v245, 16
        %v247 = vadd.s32 %v246, %v244
        %vm248 = vcmp.gt.f32.partialorder %v211, %v212
        %v249 = vld [vmem:[#allocation4] sm:$0xff]
        %v250 = vsel %vm248, %v247, %v249
        %251 = vst.msk [vmem:[#allocation4] sm:$0xff] %vm230, %v250
        %v252 = vld [vmem:[#allocation5] sm:$0xff]
        %253 = vset.pattern.permute.xlu0 0
        %254 = vperm.xlu0 %253, %v194
        %v255 = vpop.permute.xlu0 %254
        %vm256 = vcmp.eq.s32.totalorder %v209, %v255
        %v257 = vsel %vm256, %v204, 0.0
        %258 = vadd.xlane.f32.xlu0 %v257
        %v259 = vpop.xlane.xlu0 %258
        %v260 = vadd.f32 %v252, %v259
        %261 = vst.msk [vmem:[#allocation5] sm:$0xff] %vm230, %v260
        %262 = vst.msk [vmem:[#allocation2] sm:$0xff] %vm230, %v213
        %p263 = scmp.eq.s32.totalorder %s24, 1
        // Predicated region
        $region37: #{tpu_custom_call.1} parent=27 // pred_check
          %p264 = pneg %p263
        $region38: #{tpu_custom_call.1} parent=27 // pred_check_branch
          %266 = sbr.rel (%p264) target = $region40
        $region39: #{tpu_custom_call.1} parent=27 // pred_region
          %v267 = vlaneseq
          %v268 = vshrl.u32 %v267, 7
          %s269 = smul.u32 %s23, 8
          %v270 = vstv %s269
          %v271 = vadd.s32 %v268, %v270
          %vm272 = vcmp.lt.s32.totalorder %v271, 20
          %v273 = vld [vmem:[#allocation3] sm:$0xff]
          %v274 = vlog2.pop %v273
          %v275 = vmul.f32 %v274, 0.6931472
          %v276 = vld [vmem:[#allocation2] sm:$0xff]
          %v277 = vadd.f32 %v275, %v276
          %v278 = vld [vmem:[#allocation5] sm:$0xff]
          %v279 = vsub.f32 %v277, %v278
          %v280 = vld [vmem:[#allocation4] sm:$0xff]
          %v281 = vsub.s32 %v280, %v194
          %v282 = vcvt.s32.f32 %v281
          %v283 = vsel %vm272, %v279, 0.0
          %v284 = vsel %vm230, %v283, 0.0
          %285 = vadd.xlane.f32.xlu0 %v284
          %v286 = vpop.xlane.xlu0 %285
          %v287 = vrot.slane %v286, 4
          %v288 = vadd.f32 %v286, %v287
          %v289 = vrot.slane %v288, 2
          %v290 = vadd.f32 %v288, %v289
          %v291 = vrot.slane %v290, 1
          %v292 = vadd.f32 %v290, %v291
          %s293 = vtos %v292
          %v294 = vmul.f32 %v282, %v282
          %v295 = vsel %vm272, %v294, 0.0
          %v296 = vsel %vm230, %v295, 0.0
          %297 = vadd.xlane.f32.xlu0 %v296
          %v298 = vpop.xlane.xlu0 %297
          %v299 = vrot.slane %v298, 4
          %v300 = vadd.f32 %v298, %v299
          %v301 = vrot.slane %v300, 2
          %v302 = vadd.f32 %v300, %v301
          %v303 = vrot.slane %v302, 1
          %v304 = vadd.f32 %v302, %v303
          %s305 = vtos %v304
          %vm306 = vcmp.eq.s32.totalorder %v268, 0
          %vm307 = vcmp.eq.s32.totalorder %v206, 0
          %vm308 = vmand %vm306, %vm307
          %vm309 = vcmp.eq.s32.totalorder %v268, 1
          %vm310 = vmand %vm309, %vm307
          %v311 = vstv %s305
          %v312 = vsel %vm310, %v311, 0.0
          %v313 = vstv %s293
          %v314 = vsel %vm308, %v313, %v312
          %315 = vst [vmem:[%s189] sm:$0xff] %v314
        $region40: #{tpu_custom_call.1} parent=27 // pred_fallthru
          _
        %s316 = sand.u32 %s93, 1
        %s317 = scalar_lea.sflag [#allocation8], %s316
        %s318 = sand.u32 %s93, 1
        %s319 = smul.addr %s318, 8
        %s320 = scalar_lea.vmem [#allocation9], %s319
        // Predicated region
        $region41: #{tpu_custom_call.1} parent=27 // pred_check
          %p321 = pneg %p103
        $region42: #{tpu_custom_call.1} parent=27 // pred_check_branch
          %323 = sbr.rel (%p321) target = $region44
        $region43: #{tpu_custom_call.1} parent=27 // pred_region
          %325 = vsyncadd %s317, 0
          %s326 = smul.addr %s23, 8
          %s327 = scalar_lea.hbm %s2, %s326
          %s329 = sshll.u32 %s320, 4
          %s330 = int_to_ptr.vmem [resolvable:$true] %s329
          %s331 = sshll.u32 %s327, 4
          %s332 = int_to_ptr.hbm [resolvable:$true] %s331
          %334 = dma.vmem_to_hbm [thread:$0]  %s330, 128, %s332, %s317
        $region44: #{tpu_custom_call.1} parent=27 // pred_fallthru
          _
      $region28: #{tpu_custom_call.1} parent=5 // pred_fallthru
        _
      %p335 = scmp.le.s32.totalorder 2, %s14
      // Predicated region
      $region45: #{tpu_custom_call.1} parent=5 // pred_check
        %p336 = pneg %p335
      $region46: #{tpu_custom_call.1} parent=5 // pred_check_branch
        %338 = sbr.rel (%p336) target = $region48
      $region47: #{tpu_custom_call.1} parent=5 // pred_region
        %s339 = ssub.s32 %s14, 2
        // Predicated region
        $region49: #{tpu_custom_call.1} parent=47 // pred_check
          %p340 = pneg %p109
        $region50: #{tpu_custom_call.1} parent=47 // pred_check_branch
          %342 = sbr.rel (%p340) target = $region52
        $region51: #{tpu_custom_call.1} parent=47 // pred_region
          %s343 = sand.u32 %s94, 1
          %s344 = scalar_lea.sflag [#allocation8], %s343
          %s345 = sand.u32 %s94, 1
          %s346 = smul.addr %s345, 8
          %s347 = scalar_lea.vmem [#allocation9], %s346
          %349 = dma.done %s344, 128
        $region52: #{tpu_custom_call.1} parent=47 // pred_fallthru
          _
      $region48: #{tpu_custom_call.1} parent=5 // pred_fallthru
        _
    $region6: #{tpu_custom_call.1} parent=1 // loop_footer
      %s18 = sadd.s32 1, %s14
    $region7: #{tpu_custom_call.1} parent=1 // loop_footer_branch
      %13 = sbr.rel target = $region3
    $region8: #{tpu_custom_call.1} parent=1 // loop_exit
      _
    %350 = vsyncpa [#allocation7], 1
    %s351 = scalar_lea.sflag [#allocation7], 1
    %352 = vsyncpa %s351, 1
    %353 = vsyncpa [#allocation8], 1
    %s354 = scalar_lea.sflag [#allocation8], 1
    %355 = vsyncpa %s354, 1

</llo_original>
